<compile_context>
chip_gen: v5e
topology: v5e:2x2
jax: 0.10.0
libtpu: 0.0.40
codegen_flags: <defaults>
</compile_context>

<pallas_src>
import functools

import jax
import jax.numpy as jnp
from jax import lax
from jax.experimental import pallas as pl
from jax.experimental.pallas import tpu as pltpu


def fusion_kernel(img_ref, txt_ref, wi_ref, bi_ref, wt_ref, bt_ref, o_ref, *, K, S):
    # Blocks (one grid step handles Bt = M // S full batch rows):
    #   img_ref (Bt*S, Di) bf16, txt_ref (Bt*S, Dt) bf16,
    #   wi_ref (Di, K*O) bf16,  bi_ref (1, K*O) f32,
    #   wt_ref (Dt, K*O) bf16,  bt_ref (1, K*O) f32,
    #   o_ref  (Bt*S, O) f32.
    M = img_ref.shape[0]
    Bt = M // S
    KO = wi_ref.shape[1]
    O = KO // K

    # Linear projections on the MXU (bf16 operands, f32 accumulation).
    pi = jnp.dot(img_ref[...], wi_ref[...],
                 preferred_element_type=jnp.float32) + bi_ref[...]
    pt = jnp.dot(txt_ref[...], wt_ref[...],
                 preferred_element_type=jnp.float32) + bt_ref[...]

    # Elementwise fusion (dropout = identity in eval; is_first=True, exp_in=1).
    exp_out = pi * pt                                   # (Bt*S, K*O) f32

    # AvgPool1d(K, stride=K) * K  ==  group sum over K.
    # Columns were pre-permuted to k-major layout in the wrapper, so the pool
    # is a sum of K contiguous O-wide lane slices (lane-aligned for O % 128 == 0).
    # K is small and static -> unrolled.
    z = exp_out[:, 0:O]
    for k in range(1, K):
        z = z + exp_out[:, k * O:(k + 1) * O]           # (Bt*S, O) f32

    # F.normalize over the flattened (S*O,) slab of each batch row (eps=1e-12).
    # Leading-dim-only reshapes (lane dim unchanged) -> layout-trivial.
    z3 = z.reshape(Bt, S, O)
    ss = jnp.sum(z3 * z3, axis=2, keepdims=True)        # (Bt, S, 1) lane reduce (XLU)
    ss = jnp.sum(ss, axis=1, keepdims=True)             # (Bt, 1, 1) sublane reduce
    # max(sqrt(ss), 1e-12) == sqrt(max(ss, 1e-24)); single EUP rsqrt.
    inv = lax.rsqrt(jnp.maximum(ss, 1e-24))
    o_ref[...] = (z3 * inv).reshape(M, O)


def fusion_forward(img_feat, txt_feat, Wi, bi, Wt, bt, K, O, block_batch=2):
    """img_feat: (B, S, Di), txt_feat: (B, S, Dt), Wi: (Di, K*O), Wt: (Dt, K*O).

    Weights are stored as (in_features, K*O), i.e. the transpose of the torch
    nn.Linear weight, with columns in PyTorch's o-major (o*K + k) order.
    """
    B, S, Di = img_feat.shape
    _, _, Dt = txt_feat.shape
    KO = K * O
    assert B % block_batch == 0, "block_batch must divide the batch size"

    # Permute projection columns o-major (o*K + k) -> k-major (k*O + o) so the
    # pool becomes a contiguous-slice sum in the kernel. Pure re-indexing, done
    # once on the host side of the call.
    def permute_cols(w):
        return w.reshape(w.shape[0], O, K).transpose(0, 2, 1).reshape(w.shape[0], KO)

    Wi_p = permute_cols(Wi).astype(jnp.bfloat16)
    Wt_p = permute_cols(Wt).astype(jnp.bfloat16)
    bi_p = bi.reshape(O, K).transpose(1, 0).reshape(1, KO).astype(jnp.float32)
    bt_p = bt.reshape(O, K).transpose(1, 0).reshape(1, KO).astype(jnp.float32)

    # Flatten (B, S) -> rows so each grid step does one big (Bt*S, D) matmul.
    img2 = img_feat.reshape(B * S, Di).astype(jnp.bfloat16)
    txt2 = txt_feat.reshape(B * S, Dt).astype(jnp.bfloat16)

    Mb = block_batch * S
    grid = (B // block_batch,)

    out2 = pl.pallas_call(
        functools.partial(fusion_kernel, K=K, S=S),
        out_shape=jax.ShapeDtypeStruct((B * S, O), jnp.float32),
        grid=grid,
        in_specs=[
            pl.BlockSpec((Mb, Di), lambda b: (b, 0)),
            pl.BlockSpec((Mb, Dt), lambda b: (b, 0)),
            # Constant block index -> fetched once, stays VMEM-resident across
            # the grid.
            pl.BlockSpec((Di, KO), lambda b: (0, 0)),
            pl.BlockSpec((1, KO), lambda b: (0, 0)),
            pl.BlockSpec((Dt, KO), lambda b: (0, 0)),
            pl.BlockSpec((1, KO), lambda b: (0, 0)),
        ],
        out_specs=pl.BlockSpec((Mb, O), lambda b: (b, 0)),
        compiler_params=pltpu.CompilerParams(
            dimension_semantics=("parallel",),
            vmem_limit_bytes=64 * 1024 * 1024,
        ),
    )(img2, txt2, Wi_p, bi_p, Wt_p, bt_p)

    return out2.reshape(B, S, O)


if __name__ == "__main__":
    # Small, deterministic, lane/MXU-friendly config.
    B, S = 4, 8                      # batch_size = 4 (as in the spec)
    img_feat_size, txt_feat_size = 64, 48
    K, O = 4, 128                    # O multiple of 128 -> lane-dense output
    KO = K * O

    key = jax.random.PRNGKey(0)
    k1, k2, k3, k4, k5, k6 = jax.random.split(key, 6)

    img_feat = jax.random.normal(k1, (B, S, img_feat_size), dtype=jnp.float32)
    txt_feat = jax.random.normal(k2, (B, S, txt_feat_size), dtype=jnp.float32)

    # Deterministic "Linear" parameters (stored transposed: (in, out),
    # columns in PyTorch's o-major order).
    Wi = 0.1 * jax.random.normal(k3, (img_feat_size, KO), dtype=jnp.float32)
    bi = 0.1 * jax.random.normal(k4, (KO,), dtype=jnp.float32)
    Wt = 0.1 * jax.random.normal(k5, (txt_feat_size, KO), dtype=jnp.float32)
    bt = 0.1 * jax.random.normal(k6, (KO,), dtype=jnp.float32)

    z = fusion_forward(img_feat, txt_feat, Wi, bi, Wt, bt, K, O, block_batch=2)
    jax.block_until_ready(z)

    # Reference in plain JAX at matching (bf16-matmul, f32-accumulate) precision,
    # using the ORIGINAL o-major weight layout and reshape-based pooling.
    img_bf = img_feat.astype(jnp.bfloat16).reshape(B * S, img_feat_size)
    txt_bf = txt_feat.astype(jnp.bfloat16).reshape(B * S, txt_feat_size)
    pi = jnp.dot(img_bf, Wi.astype(jnp.bfloat16),
                 preferred_element_type=jnp.float32) + bi
    pt = jnp.dot(txt_bf, Wt.astype(jnp.bfloat16),
                 preferred_element_type=jnp.float32) + bt
    exp_out = (pi * pt).reshape(B, S, KO)
    pooled = exp_out.reshape(B, S, O, K).sum(-1)         # avgpool*K == group sum
    flat = pooled.reshape(B, -1)
    ref = (flat / jnp.maximum(jnp.linalg.norm(flat, axis=-1, keepdims=True), 1e-12)
           ).reshape(B, S, O)

    assert jnp.allclose(z, ref, atol=1e-4, rtol=1e-4), (
        f"max abs err = {jnp.max(jnp.abs(z - ref))}")

    print("KERNEL_OK")
</pallas_src>

<mosaic_0001>
module attributes {stable_mosaic.version = 11 : i64} {
  func.func @fusion_kernel(%arg0: i32, %arg1: memref<16x64xbf16, #tpu.memory_space<vmem>>, %arg2: memref<16x48xbf16, #tpu.memory_space<vmem>>, %arg3: memref<64x512xbf16, #tpu.memory_space<vmem>>, %arg4: memref<1x512xf32, #tpu.memory_space<vmem>>, %arg5: memref<48x512xbf16, #tpu.memory_space<vmem>>, %arg6: memref<1x512xf32, #tpu.memory_space<vmem>>, %arg7: memref<16x128xf32, #tpu.memory_space<vmem>>) attributes {dimension_semantics = [#tpu.dimension_semantics<parallel>], iteration_bounds = array<i64: 2>, scalar_prefetch = 0 : i64, scratch_operands = 0 : i64, tpu.core_type = #tpu.core_type<tc>, window_params = [{transform_indices = @transform_0, window_bounds = array<i64: 16, 64>}, {transform_indices = @transform_1, window_bounds = array<i64: 16, 48>}, {pipeline_mode = #tpu.pipeline_mode<synchronous>, transform_indices = @transform_2, window_bounds = array<i64: 64, 512>}, {pipeline_mode = #tpu.pipeline_mode<synchronous>, transform_indices = @transform_3, window_bounds = array<i64: 1, 512>}, {pipeline_mode = #tpu.pipeline_mode<synchronous>, transform_indices = @transform_4, window_bounds = array<i64: 48, 512>}, {pipeline_mode = #tpu.pipeline_mode<synchronous>, transform_indices = @transform_5, window_bounds = array<i64: 1, 512>}, {transform_indices = @transform_6, window_bounds = array<i64: 16, 128>}]} {
    %c0 = arith.constant 0 : index
    %c0_0 = arith.constant 0 : index
    %0 = vector.load %arg1[%c0, %c0_0] : memref<16x64xbf16, #tpu.memory_space<vmem>>, vector<16x64xbf16>
    %c0_1 = arith.constant 0 : index
    %c0_2 = arith.constant 0 : index
    %1 = vector.load %arg3[%c0_1, %c0_2] : memref<64x512xbf16, #tpu.memory_space<vmem>>, vector<64x512xbf16>
    %cst = arith.constant dense<0.000000e+00> : vector<16x512xf32>
    %2 = tpu.matmul %0, %1, %cst {dimension_numbers = #tpu.dot_dimension_numbers<[1], [0], [0], [1], [0, 0, 1, 1], [], []>} : vector<16x64xbf16>, vector<64x512xbf16>, vector<16x512xf32> -> vector<16x512xf32>
    %c0_3 = arith.constant 0 : index
    %c0_4 = arith.constant 0 : index
    %3 = vector.load %arg4[%c0_3, %c0_4] : memref<1x512xf32, #tpu.memory_space<vmem>>, vector<1x512xf32>
    %4 = vector.broadcast %3 : vector<1x512xf32> to vector<16x512xf32>
    %5 = arith.addf %2, %4 : vector<16x512xf32>
    %c0_5 = arith.constant 0 : index
    %c0_6 = arith.constant 0 : index
    %6 = vector.load %arg2[%c0_5, %c0_6] : memref<16x48xbf16, #tpu.memory_space<vmem>>, vector<16x48xbf16>
    %c0_7 = arith.constant 0 : index
    %c0_8 = arith.constant 0 : index
    %7 = vector.load %arg5[%c0_7, %c0_8] : memref<48x512xbf16, #tpu.memory_space<vmem>>, vector<48x512xbf16>
    %cst_9 = arith.constant dense<0.000000e+00> : vector<16x512xf32>
    %8 = tpu.matmul %6, %7, %cst_9 {dimension_numbers = #tpu.dot_dimension_numbers<[1], [0], [0], [1], [0, 0, 1, 1], [], []>} : vector<16x48xbf16>, vector<48x512xbf16>, vector<16x512xf32> -> vector<16x512xf32>
    %c0_10 = arith.constant 0 : index
    %c0_11 = arith.constant 0 : index
    %9 = vector.load %arg6[%c0_10, %c0_11] : memref<1x512xf32, #tpu.memory_space<vmem>>, vector<1x512xf32>
    %10 = vector.broadcast %9 : vector<1x512xf32> to vector<16x512xf32>
    %11 = arith.addf %8, %10 : vector<16x512xf32>
    %12 = arith.mulf %5, %11 : vector<16x512xf32>
    %13 = vector.extract_strided_slice %12 {offsets = [0, 0], sizes = [16, 128], strides = [1, 1]} : vector<16x512xf32> to vector<16x128xf32>
    %14 = vector.extract_strided_slice %12 {offsets = [0, 128], sizes = [16, 128], strides = [1, 1]} : vector<16x512xf32> to vector<16x128xf32>
    %15 = arith.addf %13, %14 : vector<16x128xf32>
    %16 = vector.extract_strided_slice %12 {offsets = [0, 256], sizes = [16, 128], strides = [1, 1]} : vector<16x512xf32> to vector<16x128xf32>
    %17 = arith.addf %15, %16 : vector<16x128xf32>
    %18 = vector.extract_strided_slice %12 {offsets = [0, 384], sizes = [16, 128], strides = [1, 1]} : vector<16x512xf32> to vector<16x128xf32>
    %19 = arith.addf %17, %18 : vector<16x128xf32>
    %20 = vector.shape_cast %19 : vector<16x128xf32> to vector<2x8x128xf32>
    %21 = arith.mulf %20, %20 : vector<2x8x128xf32>
    %cst_12 = arith.constant dense<0.000000e+00> : vector<2x8xf32>
    %22 = vector.multi_reduction <add>, %21, %cst_12 [2] : vector<2x8x128xf32> to vector<2x8xf32>
    %23 = vector.shape_cast %22 : vector<2x8xf32> to vector<2x8x1xf32>
    %cst_13 = arith.constant dense<0.000000e+00> : vector<2x1xf32>
    %24 = vector.multi_reduction <add>, %23, %cst_13 [1] : vector<2x8x1xf32> to vector<2x1xf32>
    %25 = vector.shape_cast %24 : vector<2x1xf32> to vector<2x1x1xf32>
    %cst_14 = arith.constant 1.000000e-24 : f32
    %26 = vector.broadcast %cst_14 : f32 to vector<2x1x1xf32>
    %27 = arith.maximumf %25, %26 : vector<2x1x1xf32>
    %28 = math.rsqrt %27 : vector<2x1x1xf32>
    %29 = vector.broadcast %28 : vector<2x1x1xf32> to vector<2x8x128xf32>
    %30 = arith.mulf %20, %29 : vector<2x8x128xf32>
    %31 = vector.shape_cast %30 : vector<2x8x128xf32> to vector<16x128xf32>
    %c0_15 = arith.constant 0 : index
    %c0_16 = arith.constant 0 : index
    %32 = vector.load %arg7[%c0_15, %c0_16] : memref<16x128xf32, #tpu.memory_space<vmem>>, vector<16x128xf32>
    tpu.vector_store %arg7[%c0_15, %c0_16], %31 {strides = array<i32>} : memref<16x128xf32, #tpu.memory_space<vmem>>, vector<16x128xf32>,
    return
  }
  func.func @transform_0(%arg0: i32) -> (i32, i32) {
    %c0_i32 = arith.constant 0 : i32
    %c0_i32_0 = arith.constant 0 : i32
    return %arg0, %c0_i32 : i32, i32
  }
  func.func @transform_1(%arg0: i32) -> (i32, i32) {
    %c0_i32 = arith.constant 0 : i32
    %c0_i32_0 = arith.constant 0 : i32
    return %arg0, %c0_i32 : i32, i32
  }
  func.func @transform_2(%arg0: i32) -> (i32, i32) {
    %c0_i32 = arith.constant 0 : i32
    %c0_i32_0 = arith.constant 0 : i32
    %c0_i32_1 = arith.constant 0 : i32
    return %c0_i32, %c0_i32_0 : i32, i32
  }
  func.func @transform_3(%arg0: i32) -> (i32, i32) {
    %c0_i32 = arith.constant 0 : i32
    %c0_i32_0 = arith.constant 0 : i32
    %c0_i32_1 = arith.constant 0 : i32
    return %c0_i32, %c0_i32_0 : i32, i32
  }
  func.func @transform_4(%arg0: i32) -> (i32, i32) {
    %c0_i32 = arith.constant 0 : i32
    %c0_i32_0 = arith.constant 0 : i32
    %c0_i32_1 = arith.constant 0 : i32
    return %c0_i32, %c0_i32_0 : i32, i32
  }
  func.func @transform_5(%arg0: i32) -> (i32, i32) {
    %c0_i32 = arith.constant 0 : i32
    %c0_i32_0 = arith.constant 0 : i32
    %c0_i32_1 = arith.constant 0 : i32
    return %c0_i32, %c0_i32_0 : i32, i32
  }
  func.func @transform_6(%arg0: i32) -> (i32, i32) {
    %c0_i32 = arith.constant 0 : i32
    %c0_i32_0 = arith.constant 0 : i32
    return %arg0, %c0_i32 : i32, i32
  }
}

</mosaic_0001>

<llo_original>
// kernel: tpu_custom_call.1
$region0: #{tpu_custom_call.1}
  #allocation0 [shape = 'u32[]', space=smem, size = 0x4, offset = 0x4, fixed_abs, tag = 'smem constant byte address 0x4 - core index']
  #allocation1 [shape = 'u32[72,128]{1,0:T(1,128)}', space=vmem, size = 0x9000, scoped, tag = 'internal scratch']
  %s0 = inlined_call_operand.hbm [shape: bf16[32,64], index: 0, kind: input, shape index: {}]
  %s1 = inlined_call_operand.hbm [shape: bf16[32,48], index: 1, kind: input, shape index: {}]
  %s2 = inlined_call_operand.hbm [shape: bf16[64,512], index: 2, kind: input, shape index: {}]
  %s3 = inlined_call_operand.hbm [shape: f32[1,512], index: 3, kind: input, shape index: {}]
  %s4 = inlined_call_operand.hbm [shape: bf16[48,512], index: 4, kind: input, shape index: {}]
  %s5 = inlined_call_operand.vmem [shape: f32[1,512], index: 5, kind: input, shape index: {}]
  %s6 = inlined_call_operand.hbm [shape: f32[32,128], index: 6, kind: output, shape index: {}]
  %s7 = sld [smem:[#allocation0]]
  $region77: #{tpu_custom_call.1} parent=0
    _
  %s9 = ssub.s32 1, %s7
  %s10 = scalar_select 0, %s9, %s7
  $region1: #{tpu_custom_call.1} parent=0
    #allocation2 [shape = 'u8[8192]{0}', space=vmem, size = 0x2000, scoped, tag = 'input window, operand 0']
    #allocation3 [shape = 's32[2]{0}', space=sflag, size = 0x8, scoped, tag = 'scoped memory for tpu_custom_call.1']
    #allocation4 [shape = 's32[2]{0}', space=sflag, size = 0x8, scoped, tag = 'scoped memory for tpu_custom_call.1']
    #allocation5 [shape = 'u8[8192]{0}', space=vmem, size = 0x2000, scoped, tag = 'input window, operand 1']
    #allocation6 [shape = 's32[2]{0}', space=sflag, size = 0x8, scoped, tag = 'scoped memory for tpu_custom_call.1']
    #allocation7 [shape = 'u8[65536]{0}', space=vmem, size = 0x10000, scoped, tag = 'input window, operand 2, single buffered']
    #allocation8 [shape = 'u8[2048]{0}', space=vmem, size = 0x800, scoped, tag = 'input window, operand 3, single buffered']
    #allocation9 [shape = 's32[1]{0}', space=sflag, size = 0x4, scoped, tag = 'scoped memory for tpu_custom_call.1']
    #allocation10 [shape = 'u8[49152]{0}', space=vmem, size = 0xc000, scoped, tag = 'input window, operand 4, single buffered']
    #allocation11 [shape = 'u8[16384]{0}', space=vmem, size = 0x4000, scoped, tag = 'output window, operand 0']
    %11 = vsyncpa [#allocation3], 0
    %s12 = scalar_lea.sflag [#allocation3], 1
    %13 = vsyncpa %s12, 0
    %14 = vsyncpa [#allocation6], 0
    %s15 = scalar_lea.sflag [#allocation6], 1
    %16 = vsyncpa %s15, 0
    %17 = vsyncpa [#allocation9], 0
    %18 = vsyncpa [#allocation4], 0
    %s19 = scalar_lea.sflag [#allocation4], 1
    %20 = vsyncpa %s19, 0
    loop: start=0, step=1, limit=4
    $region2: #{tpu_custom_call.1} parent=1 // loop_pre_header
      _
    $region3: #{tpu_custom_call.1} parent=1 // loop_header
      %s22 = sphi 0, %s26
      %p23 = scmp.ge.s32.totalorder %s22, 4
      %s32 = sphi 0, %s34
      %s35 = sphi 0, %s32
      %s36 = sphi 0, %s35
      %s52 = sphi 0, %s36
      %s58 = sphi 0, %s60
      %s61 = sphi 0, %s58
      %s62 = sphi 0, %s61
      %s78 = sphi 0, %s62
      %s82 = sphi 0, %s82
      %s84 = sphi 0, %s82
      %s85 = sphi 0, %s84
      %s99 = sphi 0, %s85
      %s103 = sphi 0, %s103
      %s105 = sphi 0, %s103
      %s106 = sphi 0, %s105
      %s120 = sphi 0, %s106
      %s124 = sphi 0, %s124
      %s126 = sphi 0, %s124
      %s127 = sphi 0, %s126
      %s141 = sphi 0, %s127
      %s145 = sphi 0, %s145
      %s147 = sphi 0, %s145
      %s148 = sphi 0, %s147
      %s162 = sphi 0, %s148
      %s168 = sphi 0, %s170
      %s171 = sphi 0, %s168
      %s172 = sphi 0, %s171
      %s188 = sphi 0, %s172
    $region4: #{tpu_custom_call.1} parent=1 // loop_header_branch
      %25 = sbr.rel (%p23) target = $region8
    $region5: #{tpu_custom_call.1} parent=1 // loop_body
      %s27 = ssub.s32 %s22, 1
      %s28 = ssub.s32 %s22, 2
      %s29 = sadd.s32 %s22, 1
      %s30 = ssub.s32 %s22, %s29
      %p31 = scmp.eq.s32.totalorder %s30, 0
      %s33 = sadd.s32 %s32, 1
      %s34 = scalar_select %p31, %s32, %s33
      %p37 = pneg %p31
      %p38 = scmp.eq.s32.totalorder %s22, 1
      %p39 = por %p37, %p38
      %p40 = scmp.ne.s32.totalorder %s32, %s35
      %p41 = scmp.eq.s32.totalorder %s22, 0
      %p42 = por %p40, %p41
      %p43 = scmp.ne.s32.totalorder %s32, %s35
      %p44 = scmp.eq.s32.totalorder %s27, 1
      %p45 = por %p43, %p44
      %p46 = scmp.ne.s32.totalorder %s35, %s36
      %p47 = scmp.eq.s32.totalorder %s27, 0
      %p48 = por %p46, %p47
      %p49 = scmp.ne.s32.totalorder %s35, %s36
      %p50 = scmp.eq.s32.totalorder %s28, 1
      %p51 = por %p49, %p50
      %p53 = scmp.ne.s32.totalorder %s36, %s52
      %p54 = scmp.eq.s32.totalorder %s28, 0
      %p55 = por %p53, %p54
      %s56 = ssub.s32 %s22, %s29
      %p57 = scmp.eq.s32.totalorder %s56, 0
      %s59 = sadd.s32 %s58, 1
      %s60 = scalar_select %p57, %s58, %s59
      %p63 = pneg %p57
      %p64 = scmp.eq.s32.totalorder %s22, 1
      %p65 = por %p63, %p64
      %p66 = scmp.ne.s32.totalorder %s58, %s61
      %p67 = scmp.eq.s32.totalorder %s22, 0
      %p68 = por %p66, %p67
      %p69 = scmp.ne.s32.totalorder %s58, %s61
      %p70 = scmp.eq.s32.totalorder %s27, 1
      %p71 = por %p69, %p70
      %p72 = scmp.ne.s32.totalorder %s61, %s62
      %p73 = scmp.eq.s32.totalorder %s27, 0
      %p74 = por %p72, %p73
      %p75 = scmp.ne.s32.totalorder %s61, %s62
      %p76 = scmp.eq.s32.totalorder %s28, 1
      %p77 = por %p75, %p76
      %p79 = scmp.ne.s32.totalorder %s62, %s78
      %p80 = scmp.eq.s32.totalorder %s28, 0
      %p81 = por %p79, %p80
      %s83 = sadd.s32 %s82, 1
      %p86 = scmp.eq.s32.totalorder %s22, 1
      %p87 = scmp.ne.s32.totalorder %s82, %s84
      %p88 = scmp.eq.s32.totalorder %s22, 0
      %p89 = por %p87, %p88
      %p90 = scmp.ne.s32.totalorder %s82, %s84
      %p91 = scmp.eq.s32.totalorder %s27, 1
      %p92 = por %p90, %p91
      %p93 = scmp.ne.s32.totalorder %s84, %s85
      %p94 = scmp.eq.s32.totalorder %s27, 0
      %p95 = por %p93, %p94
      %p96 = scmp.ne.s32.totalorder %s84, %s85
      %p97 = scmp.eq.s32.totalorder %s28, 1
      %p98 = por %p96, %p97
      %p100 = scmp.ne.s32.totalorder %s85, %s99
      %p101 = scmp.eq.s32.totalorder %s28, 0
      %p102 = por %p100, %p101
      %s104 = sadd.s32 %s103, 1
      %p107 = scmp.eq.s32.totalorder %s22, 1
      %p108 = scmp.ne.s32.totalorder %s103, %s105
      %p109 = scmp.eq.s32.totalorder %s22, 0
      %p110 = por %p108, %p109
      %p111 = scmp.ne.s32.totalorder %s103, %s105
      %p112 = scmp.eq.s32.totalorder %s27, 1
      %p113 = por %p111, %p112
      %p114 = scmp.ne.s32.totalorder %s105, %s106
      %p115 = scmp.eq.s32.totalorder %s27, 0
      %p116 = por %p114, %p115
      %p117 = scmp.ne.s32.totalorder %s105, %s106
      %p118 = scmp.eq.s32.totalorder %s28, 1
      %p119 = por %p117, %p118
      %p121 = scmp.ne.s32.totalorder %s106, %s120
      %p122 = scmp.eq.s32.totalorder %s28, 0
      %p123 = por %p121, %p122
      %s125 = sadd.s32 %s124, 1
      %p128 = scmp.eq.s32.totalorder %s22, 1
      %p129 = scmp.ne.s32.totalorder %s124, %s126
      %p130 = scmp.eq.s32.totalorder %s22, 0
      %p131 = por %p129, %p130
      %p132 = scmp.ne.s32.totalorder %s124, %s126
      %p133 = scmp.eq.s32.totalorder %s27, 1
      %p134 = por %p132, %p133
      %p135 = scmp.ne.s32.totalorder %s126, %s127
      %p136 = scmp.eq.s32.totalorder %s27, 0
      %p137 = por %p135, %p136
      %p138 = scmp.ne.s32.totalorder %s126, %s127
      %p139 = scmp.eq.s32.totalorder %s28, 1
      %p140 = por %p138, %p139
      %p142 = scmp.ne.s32.totalorder %s127, %s141
      %p143 = scmp.eq.s32.totalorder %s28, 0
      %p144 = por %p142, %p143
      %s146 = sadd.s32 %s145, 1
      %p149 = scmp.eq.s32.totalorder %s22, 1
      %p150 = scmp.ne.s32.totalorder %s145, %s147
      %p151 = scmp.eq.s32.totalorder %s22, 0
      %p152 = por %p150, %p151
      %p153 = scmp.ne.s32.totalorder %s145, %s147
      %p154 = scmp.eq.s32.totalorder %s27, 1
      %p155 = por %p153, %p154
      %p156 = scmp.ne.s32.totalorder %s147, %s148
      %p157 = scmp.eq.s32.totalorder %s27, 0
      %p158 = por %p156, %p157
      %p159 = scmp.ne.s32.totalorder %s147, %s148
      %p160 = scmp.eq.s32.totalorder %s28, 1
      %p161 = por %p159, %p160
      %p163 = scmp.ne.s32.totalorder %s148, %s162
      %p164 = scmp.eq.s32.totalorder %s28, 0
      %p165 = por %p163, %p164
      %s166 = ssub.s32 %s22, %s29
      %p167 = scmp.eq.s32.totalorder %s166, 0
      %s169 = sadd.s32 %s168, 1
      %s170 = scalar_select %p167, %s168, %s169
      %p173 = pneg %p167
      %p174 = scmp.eq.s32.totalorder %s22, 1
      %p175 = por %p173, %p174
      %p176 = scmp.ne.s32.totalorder %s168, %s171
      %p177 = scmp.eq.s32.totalorder %s22, 0
      %p178 = por %p176, %p177
      %p179 = scmp.ne.s32.totalorder %s168, %s171
      %p180 = scmp.eq.s32.totalorder %s27, 1
      %p181 = por %p179, %p180
      %p182 = scmp.ne.s32.totalorder %s171, %s172
      %p183 = scmp.eq.s32.totalorder %s27, 0
      %p184 = por %p182, %p183
      %p185 = scmp.ne.s32.totalorder %s171, %s172
      %p186 = scmp.eq.s32.totalorder %s28, 1
      %p187 = por %p185, %p186
      %p189 = scmp.ne.s32.totalorder %s172, %s188
      %p190 = scmp.eq.s32.totalorder %s28, 0
      %p191 = por %p189, %p190
      %p192 = scmp.le.s32.totalorder 1, %s22
      %p193 = scmp.lt.s32.totalorder %s22, 3
      %p194 = pnand %p192, %p193
      %p195 = pneg %p194
      // Predicated region
      $region9: #{tpu_custom_call.1} parent=5 // pred_check
        _
      $region10: #{tpu_custom_call.1} parent=5 // pred_check_branch
        %197 = sbr.rel (%p194) target = $region12
      $region11: #{tpu_custom_call.1} parent=5 // pred_region
        %s198 = ssub.s32 %s22, 1
        // Predicated region
        $region13: #{tpu_custom_call.1} parent=11 // pred_check
          %p199 = pneg %p95
        $region14: #{tpu_custom_call.1} parent=11 // pred_check_branch
          %201 = sbr.rel (%p199) target = $region16
        $region15: #{tpu_custom_call.1} parent=11 // pred_region
          %203 = vsyncadd [#allocation6], 0
          %s204 = sshll.u32 %s2, 4
          %s205 = int_to_ptr.hbm [resolvable:$true] %s204
          %s206 = sshll.u32 [#allocation7], 4
          %s207 = int_to_ptr.vmem [resolvable:$true] %s206
          %212 = dma.hbm_to_vmem [thread:$0]  %s205, 2048, %s207, [#allocation6], 256, 256, 16
        $region16: #{tpu_custom_call.1} parent=11 // pred_fallthru
          _
        // Predicated region
        $region17: #{tpu_custom_call.1} parent=11 // pred_check
          %p213 = pneg %p116
        $region18: #{tpu_custom_call.1} parent=11 // pred_check_branch
          %215 = sbr.rel (%p213) target = $region20
        $region19: #{tpu_custom_call.1} parent=11 // pred_region
          %217 = vsyncadd [#allocation9], 0
          %s219 = sshll.u32 %s3, 4
          %s220 = int_to_ptr.hbm [resolvable:$true] %s219
          %s221 = sshll.u32 [#allocation8], 4
          %s222 = int_to_ptr.vmem [resolvable:$true] %s221
          %224 = dma.hbm_to_vmem [thread:$0]  %s220, 64, %s222, [#allocation9]
        $region20: #{tpu_custom_call.1} parent=11 // pred_fallthru
          _
        // Predicated region
        $region21: #{tpu_custom_call.1} parent=11 // pred_check
          %p225 = pneg %p137
        $region22: #{tpu_custom_call.1} parent=11 // pred_check_branch
          %227 = sbr.rel (%p225) target = $region24
        $region23: #{tpu_custom_call.1} parent=11 // pred_region
          %229 = vsyncadd [#allocation9], 0
          %s230 = sshll.u32 %s4, 4
          %s231 = int_to_ptr.hbm [resolvable:$true] %s230
          %s232 = sshll.u32 [#allocation10], 4
          %s233 = int_to_ptr.vmem [resolvable:$true] %s232
          %238 = dma.hbm_to_vmem [thread:$0]  %s231, 1536, %s233, [#allocation9], 256, 256, 16
        $region24: #{tpu_custom_call.1} parent=11 // pred_fallthru
          _
        // Predicated region
        $region25: #{tpu_custom_call.1} parent=11 // pred_check
          %p239 = pneg %p158
        $region26: #{tpu_custom_call.1} parent=11 // pred_check_branch
          %241 = sbr.rel (%p239) target = $region28
        $region27: #{tpu_custom_call.1} parent=11 // pred_region
          _
        $region28: #{tpu_custom_call.1} parent=11 // pred_fallthru
          _
      $region12: #{tpu_custom_call.1} parent=5 // pred_fallthru
        _
      %p242 = scmp.lt.s32.totalorder %s22, 2
      // Predicated region
      $region29: #{tpu_custom_call.1} parent=5 // pred_check
        %p243 = pneg %p242
      $region30: #{tpu_custom_call.1} parent=5 // pred_check_branch
        %245 = sbr.rel (%p243) target = $region32
      $region31: #{tpu_custom_call.1} parent=5 // pred_region
        // Predicated region
        $region33: #{tpu_custom_call.1} parent=31 // pred_check
          %p246 = pneg %p42
        $region34: #{tpu_custom_call.1} parent=31 // pred_check_branch
          %248 = sbr.rel (%p246) target = $region36
        $region35: #{tpu_custom_call.1} parent=31 // pred_region
          %s249 = sand.u32 %s32, 1
          %s250 = scalar_lea.sflag [#allocation3], %s249
          %s251 = sand.u32 %s32, 1
          %s252 = smul.addr %s251, 8
          %s253 = scalar_lea.vmem [#allocation2], %s252
          %s254 = smul.u32 2, %s22
          %256 = vsyncadd %s250, 0
          %s257 = smul.addr %s254, 4
          %s258 = scalar_lea.hbm %s0, %s257
          %s259 = sshll.u32 %s258, 4
          %s260 = int_to_ptr.hbm [resolvable:$true] %s259
          %s261 = sshll.u32 %s253, 4
          %s262 = int_to_ptr.vmem [resolvable:$true] %s261
          %267 = dma.hbm_to_vmem [thread:$0]  %s260, 128, %s262, %s250, 64, 64, 4
        $region36: #{tpu_custom_call.1} parent=31 // pred_fallthru
          _
        // Predicated region
        $region37: #{tpu_custom_call.1} parent=31 // pred_check
          %p268 = pneg %p68
        $region38: #{tpu_custom_call.1} parent=31 // pred_check_branch
          %270 = sbr.rel (%p268) target = $region40
        $region39: #{tpu_custom_call.1} parent=31 // pred_region
          %s271 = sand.u32 %s22, 1
          %s272 = scalar_lea.sflag [#allocation6], %s271
          %s273 = sand.u32 %s58, 1
          %s274 = smul.addr %s273, 8
          %s275 = scalar_lea.vmem [#allocation5], %s274
          %s276 = smul.u32 2, %s22
          %278 = vsyncadd %s272, 0
          %s279 = smul.addr %s276, 4
          %s280 = scalar_lea.hbm %s1, %s279
          %s281 = sshll.u32 %s280, 4
          %s282 = int_to_ptr.hbm [resolvable:$true] %s281
          %s283 = sshll.u32 %s275, 4
          %s284 = int_to_ptr.vmem [resolvable:$true] %s283
          %289 = dma.hbm_to_vmem [thread:$0]  %s282, 128, %s284, %s272, 64, 64, 4
        $region40: #{tpu_custom_call.1} parent=31 // pred_fallthru
          _
      $region32: #{tpu_custom_call.1} parent=5 // pred_fallthru
        _
      %p290 = scmp.le.s32.totalorder 1, %s22
      %p291 = scmp.lt.s32.totalorder %s22, 3
      %p292 = pnand %p290, %p291
      %p293 = pneg %p292
      // Predicated region
      $region41: #{tpu_custom_call.1} parent=5 // pred_check
        _
      $region42: #{tpu_custom_call.1} parent=5 // pred_check_branch
        %295 = sbr.rel (%p292) target = $region44
      $region43: #{tpu_custom_call.1} parent=5 // pred_region
        %s296 = ssub.s32 %s22, 1
        %s297 = sand.u32 %s35, 1
        %s298 = scalar_lea.sflag [#allocation3], %s297
        %s299 = sand.u32 %s35, 1
        %s300 = smul.addr %s299, 8
        %s301 = scalar_lea.vmem [#allocation2], %s300
        // Predicated region
        $region45: #{tpu_custom_call.1} parent=43 // pred_check
          %p302 = pneg %p48
        $region46: #{tpu_custom_call.1} parent=43 // pred_check_branch
          %304 = sbr.rel (%p302) target = $region48
        $region47: #{tpu_custom_call.1} parent=43 // pred_region
          %306 = dma.done %s298, 128
        $region48: #{tpu_custom_call.1} parent=43 // pred_fallthru
          _
        %s307 = sand.u32 %s27, 1
        %s308 = scalar_lea.sflag [#allocation6], %s307
        %s309 = sand.u32 %s61, 1
        %s310 = smul.addr %s309, 8
        %s311 = scalar_lea.vmem [#allocation5], %s310
        // Predicated region
        $region49: #{tpu_custom_call.1} parent=43 // pred_check
          %p312 = pneg %p74
        $region50: #{tpu_custom_call.1} parent=43 // pred_check_branch
          %314 = sbr.rel (%p312) target = $region52
        $region51: #{tpu_custom_call.1} parent=43 // pred_region
          %316 = dma.done %s308, 128
        $region52: #{tpu_custom_call.1} parent=43 // pred_fallthru
          _
        // Predicated region
        $region53: #{tpu_custom_call.1} parent=43 // pred_check
          %p317 = pneg %p95
        $region54: #{tpu_custom_call.1} parent=43 // pred_check_branch
          %319 = sbr.rel (%p317) target = $region56
        $region55: #{tpu_custom_call.1} parent=43 // pred_region
          %321 = dma.done [#allocation6], 2048
        $region56: #{tpu_custom_call.1} parent=43 // pred_fallthru
          _
        // Predicated region
        $region57: #{tpu_custom_call.1} parent=43 // pred_check
          %p322 = pneg %p116
        $region58: #{tpu_custom_call.1} parent=43 // pred_check_branch
          %324 = sbr.rel (%p322) target = $region60
        $region59: #{tpu_custom_call.1} parent=43 // pred_region
          %326 = dma.done [#allocation9], 64
        $region60: #{tpu_custom_call.1} parent=43 // pred_fallthru
          _
        // Predicated region
        $region61: #{tpu_custom_call.1} parent=43 // pred_check
          %p327 = pneg %p137
        $region62: #{tpu_custom_call.1} parent=43 // pred_check_branch
          %329 = sbr.rel (%p327) target = $region64
        $region63: #{tpu_custom_call.1} parent=43 // pred_region
          %331 = dma.done [#allocation9], 1536
        $region64: #{tpu_custom_call.1} parent=43 // pred_fallthru
          _
        %s332 = sand.u32 %s35, 1
        %s333 = scalar_lea.sflag [#allocation3], %s332
        %s334 = sand.u32 %s35, 1
        %s335 = smul.addr %s334, 8
        %s336 = scalar_lea.vmem [#allocation2], %s335
        %p337 = pneg %p48
        %p338 = pneg %p45
        %s339 = sand.u32 %s27, 1
        %s340 = scalar_lea.sflag [#allocation6], %s339
        %s341 = sand.u32 %s61, 1
        %s342 = smul.addr %s341, 8
        %s343 = scalar_lea.vmem [#allocation5], %s342
        %p344 = pneg %p74
        %p345 = pneg %p71
        %p346 = pneg %p95
        %p347 = pneg %p92
        %p348 = pneg %p116
        %p349 = pneg %p113
        %p350 = pneg %p137
        %p351 = pneg %p134
        %p352 = pneg %p158
        %p353 = pneg %p155
        %p354 = pneg %p184
        %p355 = pneg %p181
        %s356 = sand.u32 %s171, 1
        %s357 = scalar_lea.sflag [#allocation4], %s356
        %s358 = sand.u32 %s171, 1
        %s359 = smul.addr %s358, 16
        %s360 = scalar_lea.vmem [#allocation11], %s359
        %s361 = smul.u32 2, %s27
        %s362 = smul.u32 2, %s27
        %s363 = smul.u32 2, %s27
        %v365 = vld [vmem:[%s301] sm:$0xf]
        %v366 = vld [vmem:[%s301 + $0x4] sm:$0xf]
        %v367 = vld [vmem:[#allocation7] sm:$0xff]
        %v368 = vld [vmem:[#allocation7 + $0x8] sm:$0xff]
        %v369 = vld [vmem:[#allocation7 + $0x10] sm:$0xff]
        %v370 = vld [vmem:[#allocation7 + $0x18] sm:$0xff]
        %v371 = vld [vmem:[#allocation7 + $0x20] sm:$0xff]
        %v372 = vld [vmem:[#allocation7 + $0x28] sm:$0xff]
        %v373 = vld [vmem:[#allocation7 + $0x30] sm:$0xff]
        %v374 = vld [vmem:[#allocation7 + $0x38] sm:$0xff]
        %v375 = vld [vmem:[#allocation7 + $0x40] sm:$0xff]
        %v376 = vld [vmem:[#allocation7 + $0x48] sm:$0xff]
        %v377 = vld [vmem:[#allocation7 + $0x50] sm:$0xff]
        %v378 = vld [vmem:[#allocation7 + $0x58] sm:$0xff]
        %v379 = vld [vmem:[#allocation7 + $0x60] sm:$0xff]
        %v380 = vld [vmem:[#allocation7 + $0x68] sm:$0xff]
        %v381 = vld [vmem:[#allocation7 + $0x70] sm:$0xff]
        %v382 = vld [vmem:[#allocation7 + $0x78] sm:$0xff]
        %v383 = vld [vmem:[#allocation8] sm:$0xf]
        %v385 = vperm.slane %v383, 0
        %v386 = vperm.slane %v383, 1
        %v387 = vperm.slane %v383, 2
        %v388 = vperm.slane %v383, 3
        %v395 = vunpack.c.l.b16 %v365
        %v396 = vunpack.c.l.b16 %v366
        %v397 = vpack.c.b16 %v396, %v395
        %v414 = vunpack.c.l.b16 %v367
        %v415 = vunpack.c.h.b16 %v367
        %v416 = vunpack.c.l.b16 %v368
        %v417 = vunpack.c.h.b16 %v368
        %v418 = vunpack.c.l.b16 %v369
        %v419 = vunpack.c.h.b16 %v369
        %v420 = vunpack.c.l.b16 %v370
        %v421 = vunpack.c.h.b16 %v370
        %v422 = vunpack.c.l.b16 %v371
        %v423 = vunpack.c.h.b16 %v371
        %v424 = vunpack.c.l.b16 %v372
        %v425 = vunpack.c.h.b16 %v372
        %v426 = vunpack.c.l.b16 %v373
        %v427 = vunpack.c.h.b16 %v373
        %v428 = vunpack.c.l.b16 %v374
        %v429 = vunpack.c.h.b16 %v374
        %v430 = vunpack.c.l.b16 %v375
        %v431 = vunpack.c.h.b16 %v375
        %v432 = vunpack.c.l.b16 %v376
        %v433 = vunpack.c.h.b16 %v376
        %v434 = vunpack.c.l.b16 %v377
        %v435 = vunpack.c.h.b16 %v377
        %v436 = vunpack.c.l.b16 %v378
        %v437 = vunpack.c.h.b16 %v378
        %v438 = vunpack.c.l.b16 %v379
        %v439 = vunpack.c.h.b16 %v379
        %v440 = vunpack.c.l.b16 %v380
        %v441 = vunpack.c.h.b16 %v380
        %v442 = vunpack.c.l.b16 %v381
        %v443 = vunpack.c.h.b16 %v381
        %v444 = vunpack.c.l.b16 %v382
        %v445 = vunpack.c.h.b16 %v382
        %v446 = vpack.c.b16 %v418, %v414
        %v447 = vpack.c.b16 %v419, %v415
        %v448 = vpack.c.b16 %v420, %v416
        %v449 = vpack.c.b16 %v421, %v417
        %v450 = vpack.c.b16 %v426, %v422
        %v451 = vpack.c.b16 %v427, %v423
        %v452 = vpack.c.b16 %v428, %v424
        %v453 = vpack.c.b16 %v429, %v425
        %v454 = vpack.c.b16 %v434, %v430
        %v455 = vpack.c.b16 %v435, %v431
        %v456 = vpack.c.b16 %v436, %v432
        %v457 = vpack.c.b16 %v437, %v433
        %v458 = vpack.c.b16 %v442, %v438
        %v459 = vpack.c.b16 %v443, %v439
        %v460 = vpack.c.b16 %v444, %v440
        %v461 = vpack.c.b16 %v445, %v441
        %vm478 = vcmask 523264
        %v480 = vsel %vm478, %v397, 0
        %482 = vmatpush.bf16.msra.mxu0 0
        %483 = vmatpush.bf16.msra.mxu0 0
        %484 = vmatpush.bf16.msra.mxu0 0
        %485 = vmatpush.bf16.msra.mxu0 0
        %486 = vmatpush.bf16.msra.mxu0 %v458
        %487 = vmatpush.bf16.msra.mxu0 %v454
        %488 = vmatpush.bf16.msra.mxu0 %v450
        %489 = vmatpush.bf16.msra.mxu0 %v446
        %490 = vmatmul.bf16.gmra.mxu0 %v480
        %v491 = vpop.f32.mrf.mxu0
        %v492 = vadd.f32 %v385, %v491
        %v493 = vpop.f32.mrf.mxu0
        %v494 = vadd.f32 %v385, %v493
        %495 = vdwg.mxu0
        %496 = vmatpush.bf16.msra.mxu0 0
        %497 = vmatpush.bf16.msra.mxu0 0
        %498 = vmatpush.bf16.msra.mxu0 0
        %499 = vmatpush.bf16.msra.mxu0 0
        %500 = vmatpush.bf16.msra.mxu0 %v459
        %501 = vmatpush.bf16.msra.mxu0 %v455
        %502 = vmatpush.bf16.msra.mxu0 %v451
        %503 = vmatpush.bf16.msra.mxu0 %v447
        %504 = vmatmul.bf16.gmra.mxu0 %v480
        %v505 = vpop.f32.mrf.mxu0
        %v506 = vadd.f32 %v386, %v505
        %v507 = vpop.f32.mrf.mxu0
        %v508 = vadd.f32 %v386, %v507
        %509 = vdwg.mxu0
        %510 = vmatpush.bf16.msra.mxu0 0
        %511 = vmatpush.bf16.msra.mxu0 0
        %512 = vmatpush.bf16.msra.mxu0 0
        %513 = vmatpush.bf16.msra.mxu0 0
        %514 = vmatpush.bf16.msra.mxu0 %v460
        %515 = vmatpush.bf16.msra.mxu0 %v456
        %516 = vmatpush.bf16.msra.mxu0 %v452
        %517 = vmatpush.bf16.msra.mxu0 %v448
        %518 = vmatmul.bf16.gmra.mxu0 %v480
        %v519 = vpop.f32.mrf.mxu0
        %v520 = vadd.f32 %v387, %v519
        %v521 = vpop.f32.mrf.mxu0
        %v522 = vadd.f32 %v387, %v521
        %523 = vdwg.mxu0
        %524 = vmatpush.bf16.msra.mxu0 0
        %525 = vmatpush.bf16.msra.mxu0 0
        %526 = vmatpush.bf16.msra.mxu0 0
        %527 = vmatpush.bf16.msra.mxu0 0
        %528 = vmatpush.bf16.msra.mxu0 %v461
        %529 = vmatpush.bf16.msra.mxu0 %v457
        %530 = vmatpush.bf16.msra.mxu0 %v453
        %531 = vmatpush.bf16.msra.mxu0 %v449
        %532 = vmatmul.bf16.gmra.mxu0 %v480
        %v533 = vpop.f32.mrf.mxu0
        %v534 = vadd.f32 %v388, %v533
        %v535 = vpop.f32.mrf.mxu0
        %v536 = vadd.f32 %v388, %v535
        %537 = vdwg.mxu0
        %v538 = vld [vmem:[%s311] sm:$0xf]
        %v539 = vld [vmem:[%s311 + $0x4] sm:$0xf]
        %v540 = vld [vmem:[#allocation10] sm:$0xff]
        %v541 = vld [vmem:[#allocation10 + $0x8] sm:$0xff]
        %v542 = vld [vmem:[#allocation10 + $0x10] sm:$0xff]
        %v543 = vld [vmem:[#allocation10 + $0x18] sm:$0xff]
        %v544 = vld [vmem:[#allocation10 + $0x20] sm:$0xff]
        %v545 = vld [vmem:[#allocation10 + $0x28] sm:$0xff]
        %v546 = vld [vmem:[#allocation10 + $0x30] sm:$0xff]
        %v547 = vld [vmem:[#allocation10 + $0x38] sm:$0xff]
        %v548 = vld [vmem:[#allocation10 + $0x40] sm:$0xff]
        %v549 = vld [vmem:[#allocation10 + $0x48] sm:$0xff]
        %v550 = vld [vmem:[#allocation10 + $0x50] sm:$0xff]
        %v551 = vld [vmem:[#allocation10 + $0x58] sm:$0xff]
        %v552 = vld [vmem:[%s5] sm:$0xf]
        %v554 = vperm.slane %v552, 0
        %v555 = vperm.slane %v552, 1
        %v556 = vperm.slane %v552, 2
        %v557 = vperm.slane %v552, 3
        %v564 = vunpack.c.l.b16 %v538
        %v565 = vunpack.c.l.b16 %v539
        %v566 = vpack.c.b16 %v565, %v564
        %v579 = vunpack.c.l.b16 %v540
        %v580 = vunpack.c.h.b16 %v540
        %v581 = vunpack.c.l.b16 %v541
        %v582 = vunpack.c.h.b16 %v541
        %v583 = vunpack.c.l.b16 %v542
        %v584 = vunpack.c.h.b16 %v542
        %v585 = vunpack.c.l.b16 %v543
        %v586 = vunpack.c.h.b16 %v543
        %v587 = vunpack.c.l.b16 %v544
        %v588 = vunpack.c.h.b16 %v544
        %v589 = vunpack.c.l.b16 %v545
        %v590 = vunpack.c.h.b16 %v545
        %v591 = vunpack.c.l.b16 %v546
        %v592 = vunpack.c.h.b16 %v546
        %v593 = vunpack.c.l.b16 %v547
        %v594 = vunpack.c.h.b16 %v547
        %v595 = vunpack.c.l.b16 %v548
        %v596 = vunpack.c.h.b16 %v548
        %v597 = vunpack.c.l.b16 %v549
        %v598 = vunpack.c.h.b16 %v549
        %v599 = vunpack.c.l.b16 %v550
        %v600 = vunpack.c.h.b16 %v550
        %v601 = vunpack.c.l.b16 %v551
        %v602 = vunpack.c.h.b16 %v551
        %v603 = vpack.c.b16 %v583, %v579
        %v604 = vpack.c.b16 %v584, %v580
        %v605 = vpack.c.b16 %v585, %v581
        %v606 = vpack.c.b16 %v586, %v582
        %v607 = vpack.c.b16 %v591, %v587
        %v608 = vpack.c.b16 %v592, %v588
        %v609 = vpack.c.b16 %v593, %v589
        %v610 = vpack.c.b16 %v594, %v590
        %v611 = vpack.c.b16 %v599, %v595
        %v612 = vpack.c.b16 %v600, %v596
        %v613 = vpack.c.b16 %v601, %v597
        %v614 = vpack.c.b16 %v602, %v598
        %vm627 = vcmask 392192
        %v629 = vsel %vm627, %v566, 0
        %631 = vmatpush.bf16.msra.mxu0 0
        %632 = vmatpush.bf16.msra.mxu0 0
        %633 = vmatpush.bf16.msra.mxu0 0
        %634 = vmatpush.bf16.msra.mxu0 0
        %635 = vmatpush.bf16.msra.mxu0 0
        %636 = vmatpush.bf16.msra.mxu0 %v611
        %637 = vmatpush.bf16.msra.mxu0 %v607
        %638 = vmatpush.bf16.msra.mxu0 %v603
        %639 = vmatmul.bf16.gmra.mxu0 %v629
        %v640 = vpop.f32.mrf.mxu0
        %v641 = vadd.f32 %v554, %v640
        %v642 = vpop.f32.mrf.mxu0
        %v643 = vadd.f32 %v554, %v642
        %644 = vdwg.mxu0
        %645 = vmatpush.bf16.msra.mxu0 0
        %646 = vmatpush.bf16.msra.mxu0 0
        %647 = vmatpush.bf16.msra.mxu0 0
        %648 = vmatpush.bf16.msra.mxu0 0
        %649 = vmatpush.bf16.msra.mxu0 0
        %650 = vmatpush.bf16.msra.mxu0 %v612
        %651 = vmatpush.bf16.msra.mxu0 %v608
        %652 = vmatpush.bf16.msra.mxu0 %v604
        %653 = vmatmul.bf16.gmra.mxu0 %v629
        %v654 = vpop.f32.mrf.mxu0
        %v655 = vadd.f32 %v555, %v654
        %v656 = vpop.f32.mrf.mxu0
        %v657 = vadd.f32 %v555, %v656
        %658 = vdwg.mxu0
        %659 = vmatpush.bf16.msra.mxu0 0
        %660 = vmatpush.bf16.msra.mxu0 0
        %661 = vmatpush.bf16.msra.mxu0 0
        %662 = vmatpush.bf16.msra.mxu0 0
        %663 = vmatpush.bf16.msra.mxu0 0
        %664 = vmatpush.bf16.msra.mxu0 %v613
        %665 = vmatpush.bf16.msra.mxu0 %v609
        %666 = vmatpush.bf16.msra.mxu0 %v605
        %667 = vmatmul.bf16.gmra.mxu0 %v629
        %v668 = vpop.f32.mrf.mxu0
        %v669 = vadd.f32 %v556, %v668
        %v670 = vpop.f32.mrf.mxu0
        %v671 = vadd.f32 %v556, %v670
        %672 = vdwg.mxu0
        %673 = vmatpush.bf16.msra.mxu0 0
        %674 = vmatpush.bf16.msra.mxu0 0
        %675 = vmatpush.bf16.msra.mxu0 0
        %676 = vmatpush.bf16.msra.mxu0 0
        %677 = vmatpush.bf16.msra.mxu0 0
        %678 = vmatpush.bf16.msra.mxu0 %v614
        %679 = vmatpush.bf16.msra.mxu0 %v610
        %680 = vmatpush.bf16.msra.mxu0 %v606
        %681 = vmatmul.bf16.gmra.mxu0 %v629
        %v682 = vpop.f32.mrf.mxu0
        %v683 = vadd.f32 %v557, %v682
        %v684 = vpop.f32.mrf.mxu0
        %v685 = vadd.f32 %v557, %v684
        %686 = vdwg.mxu0
        %v687 = vmul.f32 %v492, %v641
        %v688 = vmul.f32 %v506, %v655
        %v689 = vmul.f32 %v520, %v669
        %v690 = vmul.f32 %v534, %v683
        %v691 = vmul.f32 %v494, %v643
        %v692 = vmul.f32 %v508, %v657
        %v693 = vmul.f32 %v522, %v671
        %v694 = vmul.f32 %v536, %v685
        %v695 = vadd.f32 %v687, %v688
        %v696 = vadd.f32 %v691, %v692
        %v697 = vadd.f32 %v695, %v689
        %v698 = vadd.f32 %v696, %v693
        %v699 = vadd.f32 %v697, %v690
        %v700 = vadd.f32 %v698, %v694
        %v701 = vmul.f32 %v699, %v699
        %v702 = vmul.f32 %v700, %v700
        %703 = vadd.xlane.f32.xlu0 %v701
        %v704 = vpop.xlane.xlu0 %703
        %705 = vadd.xlane.f32.xlu0 %v702
        %v706 = vpop.xlane.xlu0 %705
        %v707 = vrot.slane %v704, 4
        %v708 = vadd.f32 %v704, %v707
        %v709 = vrot.slane %v708, 2
        %v710 = vadd.f32 %v708, %v709
        %v711 = vrot.slane %v710, 1
        %v712 = vadd.f32 %v710, %v711
        %v713 = vrot.slane %v706, 4
        %v714 = vadd.f32 %v706, %v713
        %v715 = vrot.slane %v714, 2
        %v716 = vadd.f32 %v714, %v715
        %v717 = vrot.slane %v716, 1
        %v718 = vadd.f32 %v716, %v717
        %v719 = vmax.f32 %v712, 1e-24
        %v720 = vmax.f32 %v718, 1e-24
        %v721 = vrsqrt.pop %v719
        %v722 = vmul.f32 %v721, %v719
        %v723 = vmul.f32 %v722, %v721
        %v724 = vmul.f32 0.5, %v723
        %v725 = vsub.f32 1.5, %v724
        %v726 = vmul.f32 %v721, %v725
        %vm727 = vweird.f32 %v719
        %vm728 = vweird.f32 %v721
        %vm729 = vmor %vm727, %vm728
        %v730 = vsel %vm729, %v721, %v726
        %v731 = vrsqrt.pop %v720
        %v732 = vmul.f32 %v731, %v720
        %v733 = vmul.f32 %v732, %v731
        %v734 = vmul.f32 0.5, %v733
        %v735 = vsub.f32 1.5, %v734
        %v736 = vmul.f32 %v731, %v735
        %vm737 = vweird.f32 %v720
        %vm738 = vweird.f32 %v731
        %vm739 = vmor %vm737, %vm738
        %v740 = vsel %vm739, %v731, %v736
        %v741 = vmul.f32 %v699, %v730
        %v742 = vmul.f32 %v700, %v740
        %743 = vst [vmem:[%s360] sm:$0xff] %v741
        %744 = vst [vmem:[%s360 + $0x8] sm:$0xff] %v742
        %s745 = sand.u32 %s171, 1
        %s746 = scalar_lea.sflag [#allocation4], %s745
        %s747 = sand.u32 %s171, 1
        %s748 = smul.addr %s747, 16
        %s749 = scalar_lea.vmem [#allocation11], %s748
        // Predicated region
        $region65: #{tpu_custom_call.1} parent=43 // pred_check
          %p750 = pneg %p181
        $region66: #{tpu_custom_call.1} parent=43 // pred_check_branch
          %752 = sbr.rel (%p750) target = $region68
        $region67: #{tpu_custom_call.1} parent=43 // pred_region
          %s753 = smul.u32 2, %s27
          %755 = vsyncadd %s746, 0
          %s756 = smul.addr %s753, 8
          %s757 = scalar_lea.hbm %s6, %s756
          %s758 = sshll.u32 %s749, 4
          %s759 = int_to_ptr.vmem [resolvable:$true] %s758
          %s760 = sshll.u32 %s757, 4
          %s761 = int_to_ptr.hbm [resolvable:$true] %s760
          %766 = dma.vmem_to_hbm [thread:$0]  %s759, 256, %s761, %s746, 128, 128, 8
        $region68: #{tpu_custom_call.1} parent=43 // pred_fallthru
          _
      $region44: #{tpu_custom_call.1} parent=5 // pred_fallthru
        _
      %p767 = scmp.le.s32.totalorder 2, %s22
      // Predicated region
      $region69: #{tpu_custom_call.1} parent=5 // pred_check
        %p768 = pneg %p767
      $region70: #{tpu_custom_call.1} parent=5 // pred_check_branch
        %770 = sbr.rel (%p768) target = $region72
      $region71: #{tpu_custom_call.1} parent=5 // pred_region
        %s771 = ssub.s32 %s22, 2
        // Predicated region
        $region73: #{tpu_custom_call.1} parent=71 // pred_check
          %p772 = pneg %p187
        $region74: #{tpu_custom_call.1} parent=71 // pred_check_branch
          %774 = sbr.rel (%p772) target = $region76
        $region75: #{tpu_custom_call.1} parent=71 // pred_region
          %s775 = sand.u32 %s172, 1
          %s776 = scalar_lea.sflag [#allocation4], %s775
          %s777 = sand.u32 %s172, 1
          %s778 = smul.addr %s777, 16
          %s779 = scalar_lea.vmem [#allocation11], %s778
          %781 = dma.done %s776, 256
        $region76: #{tpu_custom_call.1} parent=71 // pred_fallthru
          _
      $region72: #{tpu_custom_call.1} parent=5 // pred_fallthru
        _
    $region6: #{tpu_custom_call.1} parent=1 // loop_footer
      %s26 = sadd.s32 1, %s22
    $region7: #{tpu_custom_call.1} parent=1 // loop_footer_branch
      %21 = sbr.rel target = $region3
    $region8: #{tpu_custom_call.1} parent=1 // loop_exit
      _
    %782 = vsyncpa [#allocation3], 1
    %s783 = scalar_lea.sflag [#allocation3], 1
    %784 = vsyncpa %s783, 1
    %785 = vsyncpa [#allocation6], 1
    %s786 = scalar_lea.sflag [#allocation6], 1
    %787 = vsyncpa %s786, 1
    %788 = vsyncpa [#allocation9], 1
    %789 = vsyncpa [#allocation4], 1
    %s790 = scalar_lea.sflag [#allocation4], 1
    %791 = vsyncpa %s790, 1

</llo_original>
